<compile_context>
chip_gen: v7x
topology: tpu7x:2x2x1
jax: 0.10.0
libtpu: 0.0.40
codegen_flags: <defaults>
</compile_context>

<pallas_src>
import functools

import jax
import jax.numpy as jnp
from jax import lax
from jax.experimental import pallas as pl
from jax.experimental.pallas import tpu as pltpu


_MAX_TILE = 512
_VMEM_BUDGET = 40 * 1024 * 1024  # leave headroom under v7x's 64 MiB physical VMEM


def _choose_tile(n, d):
    """Pick a q/k tile size (same for both so positives live on the diagonal tile)."""
    def fits(t):
        # 2x double-buffered q + 2x double-buffered k + qn scratch  (5 * t * d)
        # plus the (t, t) logits block and its exp                  (2 * t * t)
        return (5 * t * d + 2 * t * t) * 4 <= _VMEM_BUDGET

    if n <= _MAX_TILE and fits(n):
        return n  # single tile, no padding
    tile = _MAX_TILE
    while tile > 128 and not fits(tile):
        tile //= 2
    return tile


def _nce_kernel(q_ref, k_ref, out_ref, qn_scr, m_scr, l_scr, pos_scr,
                *, inv_t, n_valid, tile, masked):
    """One grid step = one (batch, q-tile, k-tile) block.

    q_ref, k_ref : (1, tile, D) VMEM tiles
    out_ref      : (1, 1, 8, 128) per-(batch, q-tile) partial-sum block
    qn_scr       : (tile, D) cached L1-normalized (and 1/T-scaled) q tile
    m_scr/l_scr  : (tile, 1) online-logsumexp running max / running sum
    pos_scr      : (tile, 1) positive (diagonal) logits
    """
    qi = pl.program_id(1)
    ki = pl.program_id(2)
    nk = pl.num_programs(2)
    eps = jnp.float32(1e-12)

    # --- init per (batch, q-tile): normalize q once, fold in 1/temperature ------
    @pl.when(ki == 0)
    def _():
        q = q_ref[0].astype(jnp.float32)                                   # (tile, D)
        q_l1 = jnp.maximum(jnp.sum(jnp.abs(q), axis=-1, keepdims=True), eps)
        qn_scr[...] = q * (jnp.float32(inv_t) / q_l1)
        m_scr[...] = jnp.full_like(m_scr, -jnp.inf)
        l_scr[...] = jnp.zeros_like(l_scr)
        pos_scr[...] = jnp.zeros_like(pos_scr)

    # --- current k tile: L1 normalize --------------------------------------------
    k = k_ref[0].astype(jnp.float32)                                       # (tile, D)
    k_l1 = jnp.maximum(jnp.sum(jnp.abs(k), axis=-1, keepdims=True), eps)
    kn = k / k_l1

    qn = qn_scr[...]                                                       # (tile, D)

    # Positive logits sit on the diagonal tile (q and k share the tile size).
    @pl.when(ki == qi)
    def _():
        pos_scr[...] = jnp.sum(qn * kn, axis=-1, keepdims=True)

    # (tile, tile) similarity on the MXU; contraction on the last dim of BOTH
    # operands -> no kn transpose is materialized.  inv_t already folded into qn.
    logits = lax.dot_general(qn, kn, (((1,), (1,)), ((), ())),
                             preferred_element_type=jnp.float32)

    # --- online logsumexp update --------------------------------------------------
    m_prev = m_scr[...]
    m_new = jnp.maximum(m_prev, jnp.max(logits, axis=-1, keepdims=True))
    p = jnp.exp(logits - m_new)
    if masked:  # zero contributions from zero-padded key rows (trace-time flag)
        col = ki * tile + lax.broadcasted_iota(jnp.int32, (1, tile), 1)
        p = jnp.where(col < n_valid, p, jnp.float32(0.0))
    l_scr[...] = l_scr[...] * jnp.exp(m_prev - m_new) + jnp.sum(p, axis=-1, keepdims=True)
    m_scr[...] = m_new

    # --- finalize: per-row CE loss, reduce to this q-tile's partial sum ----------
    @pl.when(ki == nk - 1)
    def _():
        row_loss = m_scr[...] + jnp.log(l_scr[...]) - pos_scr[...]         # (tile, 1)
        if masked:  # drop zero-padded query rows
            row = qi * tile + lax.broadcasted_iota(jnp.int32, (tile, 1), 0)
            row_loss = jnp.where(row < n_valid, row_loss, jnp.float32(0.0))
        total = jnp.sum(row_loss, axis=0, keepdims=True)                   # (1, 1)
        out_ref[...] = jnp.broadcast_to(total[None, None], (1, 1, 8, 128))


def contrastive_loss_sup_seq(feat_q, feat_k, temperature=0.07, base_temperature=0.07):
    """JAX/Pallas port of contrastive_loss_sup_seq.forward (mean CE loss, scalar f32)."""
    assert feat_q.shape == feat_k.shape, (feat_q.shape, feat_k.shape)
    del base_temperature  # unused in the torch forward as well

    dim = feat_q.shape[1]
    if feat_q.ndim == 2:
        feat_q = feat_q[None]
        feat_k = feat_k[None]
    batch_size = feat_q.shape[0]
    # Exact analogue of torch `.view(batch_size, -1, dim)` on contiguous tensors.
    feat_q = jnp.reshape(feat_q, (batch_size, -1, dim))
    feat_k = jnp.reshape(feat_k, (batch_size, -1, dim))
    B, N, D = feat_q.shape

    tile = _choose_tile(N, D)
    n_pad = ((N + tile - 1) // tile) * tile
    if n_pad != N:
        pad = ((0, 0), (0, n_pad - N), (0, 0))
        feat_q = jnp.pad(feat_q, pad)
        feat_k = jnp.pad(feat_k, pad)
    nq = n_pad // tile  # number of q tiles == number of k tiles

    kernel = functools.partial(
        _nce_kernel,
        inv_t=1.0 / float(temperature),
        n_valid=N,
        tile=tile,
        masked=(n_pad != N),
    )

    # TODO(synk): for tiny N*D, batching several batch elements per grid step
    # (block (Bt, N, D) + einsum) would amortize the ~0.35us/step overhead.
    partials = pl.pallas_call(
        kernel,
        out_shape=jax.ShapeDtypeStruct((B, nq, 8, 128), jnp.float32),
        grid_spec=pltpu.PrefetchScalarGridSpec(
            num_scalar_prefetch=0,
            grid=(B, nq, nq),  # (batch, q-tile, k-tile); k-tile innermost
            in_specs=[
                pl.BlockSpec((1, tile, D), lambda b, qi, ki: (b, qi, 0)),
                pl.BlockSpec((1, tile, D), lambda b, qi, ki: (b, ki, 0)),
            ],
            out_specs=pl.BlockSpec((1, 1, 8, 128), lambda b, qi, ki: (b, qi, 0, 0)),
            scratch_shapes=[
                pltpu.VMEM((tile, D), jnp.float32),  # qn (normalized, 1/T-scaled)
                pltpu.VMEM((tile, 1), jnp.float32),  # running max m
                pltpu.VMEM((tile, 1), jnp.float32),  # running sum l
                pltpu.VMEM((tile, 1), jnp.float32),  # positive logits
            ],
        ),
        compiler_params=pltpu.CompilerParams(
            dimension_semantics=("parallel", "parallel", "arbitrary"),
            vmem_limit_bytes=48 * 1024 * 1024,
        ),
    )(feat_q, feat_k)

    # Final reduction / mean outside the kernel (each (b, q-tile) block holds a
    # replicated scalar partial sum in lane 0 of sublane 0).
    return jnp.sum(partials[:, :, 0, 0]) / jnp.float32(B * N)


def _reference_loss(feat_q, feat_k, temperature=0.07):
    """Pure-JAX reference mirroring the torch code literally (for validation)."""
    dim = feat_q.shape[1]
    if feat_q.ndim == 2:
        feat_q = feat_q[None]
        feat_k = feat_k[None]
    B = feat_q.shape[0]
    q = jnp.reshape(feat_q, (B, -1, dim)).astype(jnp.float32)
    k = jnp.reshape(feat_k, (B, -1, dim)).astype(jnp.float32)
    q = q / jnp.maximum(jnp.sum(jnp.abs(q), -1, keepdims=True), 1e-12)
    k = k / jnp.maximum(jnp.sum(jnp.abs(k), -1, keepdims=True), 1e-12)
    N = q.shape[1]
    hi = lax.Precision.HIGHEST
    l_pos = jnp.einsum("bnd,bnd->bn", q, k, precision=hi).reshape(-1, 1)
    l_neg = jnp.einsum("bnd,bmd->bnm", q, k, precision=hi)
    eye = jnp.eye(N, dtype=bool)[None]
    l_neg = jnp.where(eye, -jnp.inf, l_neg).reshape(-1, N)
    out = jnp.concatenate([l_pos, l_neg], axis=1) / temperature
    lse = jax.scipy.special.logsumexp(out, axis=1)
    return jnp.mean(lse - out[:, 0])


if __name__ == "__main__":
    key = jax.random.PRNGKey(0)
    kq, kk, kq2, kk2 = jax.random.split(key, 4)

    # Small shape (single-tile path): B=2, dim=32, 8 patches per batch element
    # after the `.view(B, -1, dim)` reshape.
    feat_q = jax.random.normal(kq, (2, 32, 8), dtype=jnp.float32)
    feat_k = jax.random.normal(kk, (2, 32, 8), dtype=jnp.float32)
    loss = jax.block_until_ready(contrastive_loss_sup_seq(feat_q, feat_k, temperature=0.07))
    ref = jax.block_until_ready(_reference_loss(feat_q, feat_k, temperature=0.07))
    assert jnp.allclose(loss, ref, rtol=1e-5, atol=1e-5), (loss, ref)

    # Larger patch count exercising the tiled online-logsumexp path with a masked
    # padded tail: dim=32, N = 650 patches -> padded to 1024, 2x2 q/k tiles.
    feat_q2 = jax.random.normal(kq2, (1, 32, 650), dtype=jnp.float32)
    feat_k2 = jax.random.normal(kk2, (1, 32, 650), dtype=jnp.float32)
    loss2 = jax.block_until_ready(contrastive_loss_sup_seq(feat_q2, feat_k2, temperature=0.07))
    ref2 = jax.block_until_ready(_reference_loss(feat_q2, feat_k2, temperature=0.07))
    assert jnp.allclose(loss2, ref2, rtol=1e-4, atol=1e-4), (loss2, ref2)

    print("KERNEL_OK")
</pallas_src>

<mosaic_0001>
module attributes {stable_mosaic.version = 11 : i64} {
  func.func @_nce_kernel(%arg0: i32, %arg1: i32, %arg2: i32, %arg3: memref<1x8x32xf32, #tpu.memory_space<vmem>>, %arg4: memref<1x8x32xf32, #tpu.memory_space<vmem>>, %arg5: memref<1x1x8x128xf32, #tpu.memory_space<vmem>>, %arg6: memref<8x32xf32, #tpu.memory_space<vmem>>, %arg7: memref<8x1xf32, #tpu.memory_space<vmem>>, %arg8: memref<8x1xf32, #tpu.memory_space<vmem>>, %arg9: memref<8x1xf32, #tpu.memory_space<vmem>>) attributes {dimension_semantics = [#tpu.dimension_semantics<parallel>, #tpu.dimension_semantics<parallel>, #tpu.dimension_semantics<arbitrary>], iteration_bounds = array<i64: 2, 1, 1>, scalar_prefetch = 0 : i64, scratch_operands = 4 : i64, tpu.core_type = #tpu.core_type<tc>, window_params = [{transform_indices = @transform_0, window_bounds = array<i64: 1, 8, 32>}, {transform_indices = @transform_1, window_bounds = array<i64: 1, 8, 32>}, {transform_indices = @transform_2, window_bounds = array<i64: 1, 1, 8, 128>}]} {
    %c0_i32 = arith.constant 0 : i32
    %0 = arith.cmpi eq, %arg2, %c0_i32 : i32
    %1 = arith.extui %0 : i1 to i32
    %cst = arith.constant 9.99999996E-13 : f32
    %c0_i32_0 = arith.constant 0 : i32
    %2 = arith.cmpi ne, %1, %c0_i32_0 : i32
    scf.if %2 {
      %c0_21 = arith.constant 0 : index
      %c0_22 = arith.constant 0 : index
      %c0_23 = arith.constant 0 : index
      %36 = vector.load %arg3[%c0_21, %c0_22, %c0_23] : memref<1x8x32xf32, #tpu.memory_space<vmem>>, vector<1x8x32xf32>
      %37 = vector.shape_cast %36 : vector<1x8x32xf32> to vector<8x32xf32>
      %38 = math.absf %37 : vector<8x32xf32>
      %cst_24 = arith.constant dense<0.000000e+00> : vector<8xf32>
      %39 = vector.multi_reduction <add>, %38, %cst_24 [1] : vector<8x32xf32> to vector<8xf32>
      %40 = vector.shape_cast %39 : vector<8xf32> to vector<8x1xf32>
      %41 = vector.broadcast %cst : f32 to vector<8x1xf32>
      %42 = arith.maximumf %40, %41 : vector<8x1xf32>
      %cst_25 = arith.constant 14.2857141 : f32
      %43 = vector.broadcast %cst_25 : f32 to vector<8x1xf32>
      %44 = arith.divf %43, %42 : vector<8x1xf32>
      %45 = vector.broadcast %44 : vector<8x1xf32> to vector<8x32xf32>
      %46 = arith.mulf %37, %45 : vector<8x32xf32>
      %c0_26 = arith.constant 0 : index
      %c0_27 = arith.constant 0 : index
      %47 = vector.load %arg6[%c0_26, %c0_27] : memref<8x32xf32, #tpu.memory_space<vmem>>, vector<8x32xf32>
      tpu.vector_store %arg6[%c0_26, %c0_27], %46 {strides = array<i32>} : memref<8x32xf32, #tpu.memory_space<vmem>>, vector<8x32xf32>,
      %cst_28 = arith.constant 0xFF800000 : f32
      %48 = vector.broadcast %cst_28 : f32 to vector<8x1xf32>
      %c0_29 = arith.constant 0 : index
      %c0_30 = arith.constant 0 : index
      %49 = vector.load %arg7[%c0_29, %c0_30] : memref<8x1xf32, #tpu.memory_space<vmem>>, vector<8x1xf32>
      tpu.vector_store %arg7[%c0_29, %c0_30], %48 {strides = array<i32>} : memref<8x1xf32, #tpu.memory_space<vmem>>, vector<8x1xf32>,
      %cst_31 = arith.constant 0.000000e+00 : f32
      %50 = vector.broadcast %cst_31 : f32 to vector<8x1xf32>
      %c0_32 = arith.constant 0 : index
      %c0_33 = arith.constant 0 : index
      %51 = vector.load %arg8[%c0_32, %c0_33] : memref<8x1xf32, #tpu.memory_space<vmem>>, vector<8x1xf32>
      tpu.vector_store %arg8[%c0_32, %c0_33], %50 {strides = array<i32>} : memref<8x1xf32, #tpu.memory_space<vmem>>, vector<8x1xf32>,
      %cst_34 = arith.constant 0.000000e+00 : f32
      %52 = vector.broadcast %cst_34 : f32 to vector<8x1xf32>
      %c0_35 = arith.constant 0 : index
      %c0_36 = arith.constant 0 : index
      %53 = vector.load %arg9[%c0_35, %c0_36] : memref<8x1xf32, #tpu.memory_space<vmem>>, vector<8x1xf32>
      tpu.vector_store %arg9[%c0_35, %c0_36], %52 {strides = array<i32>} : memref<8x1xf32, #tpu.memory_space<vmem>>, vector<8x1xf32>,
    } else {
    }
    %c0 = arith.constant 0 : index
    %c0_1 = arith.constant 0 : index
    %c0_2 = arith.constant 0 : index
    %3 = vector.load %arg4[%c0, %c0_1, %c0_2] : memref<1x8x32xf32, #tpu.memory_space<vmem>>, vector<1x8x32xf32>
    %4 = vector.shape_cast %3 : vector<1x8x32xf32> to vector<8x32xf32>
    %5 = math.absf %4 : vector<8x32xf32>
    %cst_3 = arith.constant dense<0.000000e+00> : vector<8xf32>
    %6 = vector.multi_reduction <add>, %5, %cst_3 [1] : vector<8x32xf32> to vector<8xf32>
    %7 = vector.shape_cast %6 : vector<8xf32> to vector<8x1xf32>
    %cst_4 = arith.constant 9.99999996E-13 : f32
    %8 = vector.broadcast %cst_4 : f32 to vector<8x1xf32>
    %9 = arith.maximumf %7, %8 : vector<8x1xf32>
    %10 = vector.broadcast %9 : vector<8x1xf32> to vector<8x32xf32>
    %11 = arith.divf %4, %10 : vector<8x32xf32>
    %c0_5 = arith.constant 0 : index
    %c0_6 = arith.constant 0 : index
    %12 = vector.load %arg6[%c0_5, %c0_6] : memref<8x32xf32, #tpu.memory_space<vmem>>, vector<8x32xf32>
    %13 = arith.cmpi eq, %arg2, %arg1 : i32
    %14 = arith.extui %13 : i1 to i32
    %c0_i32_7 = arith.constant 0 : i32
    %15 = arith.cmpi ne, %14, %c0_i32_7 : i32
    scf.if %15 {
      %36 = arith.mulf %12, %11 : vector<8x32xf32>
      %cst_21 = arith.constant dense<0.000000e+00> : vector<8xf32>
      %37 = vector.multi_reduction <add>, %36, %cst_21 [1] : vector<8x32xf32> to vector<8xf32>
      %38 = vector.shape_cast %37 : vector<8xf32> to vector<8x1xf32>
      %c0_22 = arith.constant 0 : index
      %c0_23 = arith.constant 0 : index
      %39 = vector.load %arg9[%c0_22, %c0_23] : memref<8x1xf32, #tpu.memory_space<vmem>>, vector<8x1xf32>
      tpu.vector_store %arg9[%c0_22, %c0_23], %38 {strides = array<i32>} : memref<8x1xf32, #tpu.memory_space<vmem>>, vector<8x1xf32>,
    } else {
    }
    %cst_8 = arith.constant dense<0.000000e+00> : vector<8x8xf32>
    %16 = tpu.matmul %12, %11, %cst_8 {dimension_numbers = #tpu.dot_dimension_numbers<[1], [1], [0], [0], [0, 0, 1, 0], [], []>} : vector<8x32xf32>, vector<8x32xf32>, vector<8x8xf32> -> vector<8x8xf32>
    %c0_9 = arith.constant 0 : index
    %c0_10 = arith.constant 0 : index
    %17 = vector.load %arg7[%c0_9, %c0_10] : memref<8x1xf32, #tpu.memory_space<vmem>>, vector<8x1xf32>
    %cst_11 = arith.constant dense<0xFF800000> : vector<8xf32>
    %18 = vector.multi_reduction <maximumf>, %16, %cst_11 [1] : vector<8x8xf32> to vector<8xf32>
    %19 = vector.shape_cast %18 : vector<8xf32> to vector<8x1xf32>
    %20 = arith.maximumf %17, %19 : vector<8x1xf32>
    %21 = vector.broadcast %20 : vector<8x1xf32> to vector<8x8xf32>
    %22 = arith.subf %16, %21 : vector<8x8xf32>
    %23 = math.exp %22 : vector<8x8xf32>
    %c0_12 = arith.constant 0 : index
    %c0_13 = arith.constant 0 : index
    %24 = vector.load %arg8[%c0_12, %c0_13] : memref<8x1xf32, #tpu.memory_space<vmem>>, vector<8x1xf32>
    %25 = arith.subf %17, %20 : vector<8x1xf32>
    %26 = math.exp %25 : vector<8x1xf32>
    %27 = arith.mulf %24, %26 : vector<8x1xf32>
    %cst_14 = arith.constant dense<0.000000e+00> : vector<8xf32>
    %28 = vector.multi_reduction <add>, %23, %cst_14 [1] : vector<8x8xf32> to vector<8xf32>
    %29 = vector.shape_cast %28 : vector<8xf32> to vector<8x1xf32>
    %30 = arith.addf %27, %29 : vector<8x1xf32>
    %c0_15 = arith.constant 0 : index
    %c0_16 = arith.constant 0 : index
    %31 = vector.load %arg8[%c0_15, %c0_16] : memref<8x1xf32, #tpu.memory_space<vmem>>, vector<8x1xf32>
    tpu.vector_store %arg8[%c0_15, %c0_16], %30 {strides = array<i32>} : memref<8x1xf32, #tpu.memory_space<vmem>>, vector<8x1xf32>,
    %c0_17 = arith.constant 0 : index
    %c0_18 = arith.constant 0 : index
    %32 = vector.load %arg7[%c0_17, %c0_18] : memref<8x1xf32, #tpu.memory_space<vmem>>, vector<8x1xf32>
    tpu.vector_store %arg7[%c0_17, %c0_18], %20 {strides = array<i32>} : memref<8x1xf32, #tpu.memory_space<vmem>>, vector<8x1xf32>,
    %c0_i32_19 = arith.constant 0 : i32
    %33 = arith.cmpi eq, %arg2, %c0_i32_19 : i32
    %34 = arith.extui %33 : i1 to i32
    %c0_i32_20 = arith.constant 0 : i32
    %35 = arith.cmpi ne, %34, %c0_i32_20 : i32
    scf.if %35 {
      %c0_21 = arith.constant 0 : index
      %c0_22 = arith.constant 0 : index
      %36 = vector.load %arg7[%c0_21, %c0_22] : memref<8x1xf32, #tpu.memory_space<vmem>>, vector<8x1xf32>
      %c0_23 = arith.constant 0 : index
      %c0_24 = arith.constant 0 : index
      %37 = vector.load %arg8[%c0_23, %c0_24] : memref<8x1xf32, #tpu.memory_space<vmem>>, vector<8x1xf32>
      %38 = math.log %37 : vector<8x1xf32>
      %39 = arith.addf %36, %38 : vector<8x1xf32>
      %c0_25 = arith.constant 0 : index
      %c0_26 = arith.constant 0 : index
      %40 = vector.load %arg9[%c0_25, %c0_26] : memref<8x1xf32, #tpu.memory_space<vmem>>, vector<8x1xf32>
      %41 = arith.subf %39, %40 : vector<8x1xf32>
      %cst_27 = arith.constant dense<0.000000e+00> : vector<1xf32>
      %42 = vector.multi_reduction <add>, %41, %cst_27 [0] : vector<8x1xf32> to vector<1xf32>
      %43 = vector.shape_cast %42 : vector<1xf32> to vector<1x1xf32>
      %44 = vector.shape_cast %43 : vector<1x1xf32> to vector<1x1x1x1xf32>
      %45 = vector.shape_cast %44 : vector<1x1x1x1xf32> to vector<1x1x1x1xf32>
      %46 = vector.broadcast %45 : vector<1x1x1x1xf32> to vector<1x1x8x128xf32>
      %c0_28 = arith.constant 0 : index
      %c0_29 = arith.constant 0 : index
      %c0_30 = arith.constant 0 : index
      %c0_31 = arith.constant 0 : index
      %47 = vector.load %arg5[%c0_28, %c0_29, %c0_30, %c0_31] : memref<1x1x8x128xf32, #tpu.memory_space<vmem>>, vector<1x1x8x128xf32>
      tpu.vector_store %arg5[%c0_28, %c0_29, %c0_30, %c0_31], %46 {strides = array<i32>} : memref<1x1x8x128xf32, #tpu.memory_space<vmem>>, vector<1x1x8x128xf32>,
    } else {
    }
    return
  }
  func.func @transform_0(%arg0: i32, %arg1: i32, %arg2: i32) -> (i32, i32, i32) {
    %c0_i32 = arith.constant 0 : i32
    %c0_i32_0 = arith.constant 0 : i32
    return %arg0, %arg1, %c0_i32 : i32, i32, i32
  }
  func.func @transform_1(%arg0: i32, %arg1: i32, %arg2: i32) -> (i32, i32, i32) {
    %c0_i32 = arith.constant 0 : i32
    %c0_i32_0 = arith.constant 0 : i32
    return %arg0, %arg2, %c0_i32 : i32, i32, i32
  }
  func.func @transform_2(%arg0: i32, %arg1: i32, %arg2: i32) -> (i32, i32, i32, i32) {
    %c0_i32 = arith.constant 0 : i32
    %c0_i32_0 = arith.constant 0 : i32
    %c0_i32_1 = arith.constant 0 : i32
    return %arg0, %arg1, %c0_i32, %c0_i32_0 : i32, i32, i32, i32
  }
}

</mosaic_0001>

<llo_original>
// kernel: tpu_custom_call.1
$region0: #{tpu_custom_call.1}
  #allocation0 [shape = 'u32[]', space=smem, size = 0x4, offset = 0x4, fixed_abs, tag = 'smem constant byte address 0x4 - core index']
  #allocation1 [shape = 'u32[144,128]{1,0:T(1,128)}', space=vmem, size = 0x12000, scoped, tag = 'internal scratch']
  #allocation2 [shape = 'f32[8,32]{1,0:T(8,128)}', space=vmem, size = 0x1000, scoped, tag = 'scratch operand']
  #allocation3 [shape = 'f32[8,1]{1,0:T(8,128)}', space=vmem, size = 0x1000, scoped, tag = 'scratch operand']
  #allocation4 [shape = 'f32[8,1]{1,0:T(8,128)}', space=vmem, size = 0x1000, scoped, tag = 'scratch operand']
  #allocation5 [shape = 'f32[8,1]{1,0:T(8,128)}', space=vmem, size = 0x1000, scoped, tag = 'scratch operand']
  %s0 = inlined_call_operand.hbm [shape: f32[2,8,32], index: 0, kind: input, shape index: {}]
  %s1 = inlined_call_operand.hbm [shape: f32[2,8,32], index: 1, kind: input, shape index: {}]
  %s2 = inlined_call_operand.hbm [shape: f32[2,1,8,128], index: 2, kind: output, shape index: {}]
  %s3 = sld [smem:[#allocation0]]
  $region61: #{tpu_custom_call.1} parent=0
    _
  %s5 = ssub.s32 1, %s3
  %s6 = scalar_select 0, %s5, %s3
  $region1: #{tpu_custom_call.1} parent=0
    #allocation6 [shape = 'u8[8192]{0}', space=vmem, size = 0x2000, scoped, tag = 'input window, operand 0']
    #allocation7 [shape = 's32[2]{0}', space=sflag, size = 0x8, scoped, tag = 'scoped memory for tpu_custom_call.1']
    #allocation8 [shape = 's32[2]{0}', space=sflag, size = 0x8, scoped, tag = 'scoped memory for tpu_custom_call.1']
    #allocation9 [shape = 'u8[8192]{0}', space=vmem, size = 0x2000, scoped, tag = 'input window, operand 1']
    #allocation10 [shape = 's32[2]{0}', space=sflag, size = 0x8, scoped, tag = 'scoped memory for tpu_custom_call.1']
    #allocation11 [shape = 'u8[8192]{0}', space=vmem, size = 0x2000, scoped, tag = 'output window, operand 0']
    %7 = vsyncpa [#allocation7], 0
    %s8 = scalar_lea.sflag [#allocation7], 1
    %9 = vsyncpa %s8, 0
    %10 = vsyncpa [#allocation10], 0
    %s11 = scalar_lea.sflag [#allocation10], 1
    %12 = vsyncpa %s11, 0
    %13 = vsyncpa [#allocation8], 0
    %s14 = scalar_lea.sflag [#allocation8], 1
    %15 = vsyncpa %s14, 0
    loop: start=0, step=1, limit=4
    $region2: #{tpu_custom_call.1} parent=1 // loop_pre_header
      _
    $region3: #{tpu_custom_call.1} parent=1 // loop_header
      %s17 = sphi 0, %s21
      %p18 = scmp.ge.s32.totalorder %s17, 4
      %s24 = sphi 0, %s43
      %s25 = sphi 0, %s39
      %s26 = sphi 0, %s35
      %s27 = sphi 0, %s24
      %s28 = sphi 0, %s25
      %s29 = sphi 0, %s26
      %s30 = sphi 0, %s27
      %s31 = sphi 0, %s28
      %s32 = sphi 0, %s29
      %s48 = sphi 0, %s50
      %s51 = sphi 0, %s48
      %s52 = sphi 0, %s51
      %s68 = sphi 0, %s52
      %s76 = sphi 0, %s78
      %s79 = sphi 0, %s76
      %s80 = sphi 0, %s79
      %s96 = sphi 0, %s80
      %s104 = sphi 0, %s106
      %s107 = sphi 0, %s104
      %s108 = sphi 0, %s107
      %s124 = sphi 0, %s108
    $region4: #{tpu_custom_call.1} parent=1 // loop_header_branch
      %20 = sbr.rel (%p18) target = $region8
    $region5: #{tpu_custom_call.1} parent=1 // loop_body
      %s22 = ssub.s32 %s17, 1
      %s23 = ssub.s32 %s17, 2
      %s33 = sadd.s32 1, %s26
      %p34 = scmp.ge.s32.totalorder %s33, 1
      %s35 = scalar_select %p34, 0, %s33
      %s36 = sadd.s32 1, %s25
      %s37 = scalar_select %p34, %s36, %s25
      %p38 = scmp.ge.s32.totalorder %s37, 1
      %s39 = scalar_select %p38, 0, %s37
      %s40 = sadd.s32 1, %s24
      %s41 = scalar_select %p38, %s40, %s24
      %p42 = scmp.ge.s32.totalorder %s41, 2
      %s43 = scalar_select %p42, 0, %s41
      %s44 = ssub.s32 %s24, %s43
      %s45 = ssub.s32 %s25, %s39
      %s46 = sor.u32 %s44, %s45
      %p47 = scmp.eq.s32.totalorder %s46, 0
      %s49 = sadd.s32 %s48, 1
      %s50 = scalar_select %p47, %s48, %s49
      %p53 = pneg %p47
      %p54 = scmp.eq.s32.totalorder %s17, 1
      %p55 = por %p53, %p54
      %p56 = scmp.ne.s32.totalorder %s48, %s51
      %p57 = scmp.eq.s32.totalorder %s17, 0
      %p58 = por %p56, %p57
      %p59 = scmp.ne.s32.totalorder %s48, %s51
      %p60 = scmp.eq.s32.totalorder %s22, 1
      %p61 = por %p59, %p60
      %p62 = scmp.ne.s32.totalorder %s51, %s52
      %p63 = scmp.eq.s32.totalorder %s22, 0
      %p64 = por %p62, %p63
      %p65 = scmp.ne.s32.totalorder %s51, %s52
      %p66 = scmp.eq.s32.totalorder %s23, 1
      %p67 = por %p65, %p66
      %p69 = scmp.ne.s32.totalorder %s52, %s68
      %p70 = scmp.eq.s32.totalorder %s23, 0
      %p71 = por %p69, %p70
      %s72 = ssub.s32 %s24, %s43
      %s73 = ssub.s32 %s26, %s35
      %s74 = sor.u32 %s72, %s73
      %p75 = scmp.eq.s32.totalorder %s74, 0
      %s77 = sadd.s32 %s76, 1
      %s78 = scalar_select %p75, %s76, %s77
      %p81 = pneg %p75
      %p82 = scmp.eq.s32.totalorder %s17, 1
      %p83 = por %p81, %p82
      %p84 = scmp.ne.s32.totalorder %s76, %s79
      %p85 = scmp.eq.s32.totalorder %s17, 0
      %p86 = por %p84, %p85
      %p87 = scmp.ne.s32.totalorder %s76, %s79
      %p88 = scmp.eq.s32.totalorder %s22, 1
      %p89 = por %p87, %p88
      %p90 = scmp.ne.s32.totalorder %s79, %s80
      %p91 = scmp.eq.s32.totalorder %s22, 0
      %p92 = por %p90, %p91
      %p93 = scmp.ne.s32.totalorder %s79, %s80
      %p94 = scmp.eq.s32.totalorder %s23, 1
      %p95 = por %p93, %p94
      %p97 = scmp.ne.s32.totalorder %s80, %s96
      %p98 = scmp.eq.s32.totalorder %s23, 0
      %p99 = por %p97, %p98
      %s100 = ssub.s32 %s24, %s43
      %s101 = ssub.s32 %s25, %s39
      %s102 = sor.u32 %s100, %s101
      %p103 = scmp.eq.s32.totalorder %s102, 0
      %s105 = sadd.s32 %s104, 1
      %s106 = scalar_select %p103, %s104, %s105
      %p109 = pneg %p103
      %p110 = scmp.eq.s32.totalorder %s17, 1
      %p111 = por %p109, %p110
      %p112 = scmp.ne.s32.totalorder %s104, %s107
      %p113 = scmp.eq.s32.totalorder %s17, 0
      %p114 = por %p112, %p113
      %p115 = scmp.ne.s32.totalorder %s104, %s107
      %p116 = scmp.eq.s32.totalorder %s22, 1
      %p117 = por %p115, %p116
      %p118 = scmp.ne.s32.totalorder %s107, %s108
      %p119 = scmp.eq.s32.totalorder %s22, 0
      %p120 = por %p118, %p119
      %p121 = scmp.ne.s32.totalorder %s107, %s108
      %p122 = scmp.eq.s32.totalorder %s23, 1
      %p123 = por %p121, %p122
      %p125 = scmp.ne.s32.totalorder %s108, %s124
      %p126 = scmp.eq.s32.totalorder %s23, 0
      %p127 = por %p125, %p126
      %p128 = scmp.le.s32.totalorder 1, %s17
      %p129 = scmp.lt.s32.totalorder %s17, 3
      %p130 = pnand %p128, %p129
      %p131 = pneg %p130
      // Predicated region
      $region9: #{tpu_custom_call.1} parent=5 // pred_check
        _
      $region10: #{tpu_custom_call.1} parent=5 // pred_check_branch
        %133 = sbr.rel (%p130) target = $region12
      $region11: #{tpu_custom_call.1} parent=5 // pred_region
        %s134 = ssub.s32 %s17, 1
      $region12: #{tpu_custom_call.1} parent=5 // pred_fallthru
        _
      %p135 = scmp.lt.s32.totalorder %s17, 2
      // Predicated region
      $region13: #{tpu_custom_call.1} parent=5 // pred_check
        %p136 = pneg %p135
      $region14: #{tpu_custom_call.1} parent=5 // pred_check_branch
        %138 = sbr.rel (%p136) target = $region16
      $region15: #{tpu_custom_call.1} parent=5 // pred_region
        // Predicated region
        $region17: #{tpu_custom_call.1} parent=15 // pred_check
          %p139 = pneg %p58
        $region18: #{tpu_custom_call.1} parent=15 // pred_check_branch
          %141 = sbr.rel (%p139) target = $region20
        $region19: #{tpu_custom_call.1} parent=15 // pred_region
          %s142 = sand.u32 %s48, 1
          %s143 = scalar_lea.sflag [#allocation7], %s142
          %s144 = sand.u32 %s48, 1
          %s145 = smul.addr %s144, 8
          %s146 = scalar_lea.vmem [#allocation6], %s145
          %s148 = ssub.s32 128, 128
          %149 = vsyncadd %s143, %s148
          %s150 = sadd.s32 %s25, %s24
          %s151 = smul.addr %s150, 128
          %s152 = scalar_lea.hbm %s0, %s151
          %s154 = sshll.u32 %s146, 4
          %s155 = int_to_ptr.vmem [resolvable:$true] %s154
          %157 = dma.hbm_to_vmem [thread:$0]  %s152, 128, %s155, %s143
        $region20: #{tpu_custom_call.1} parent=15 // pred_fallthru
          _
        // Predicated region
        $region21: #{tpu_custom_call.1} parent=15 // pred_check
          %p158 = pneg %p86
        $region22: #{tpu_custom_call.1} parent=15 // pred_check_branch
          %160 = sbr.rel (%p158) target = $region24
        $region23: #{tpu_custom_call.1} parent=15 // pred_region
          %s161 = sand.u32 %s76, 1
          %s162 = scalar_lea.sflag [#allocation10], %s161
          %s163 = sand.u32 %s76, 1
          %s164 = smul.addr %s163, 8
          %s165 = scalar_lea.vmem [#allocation9], %s164
          %s167 = ssub.s32 128, 128
          %168 = vsyncadd %s162, %s167
          %s169 = sadd.s32 %s26, %s24
          %s170 = smul.addr %s169, 128
          %s171 = scalar_lea.hbm %s1, %s170
          %s173 = sshll.u32 %s165, 4
          %s174 = int_to_ptr.vmem [resolvable:$true] %s173
          %176 = dma.hbm_to_vmem [thread:$0]  %s171, 128, %s174, %s162
        $region24: #{tpu_custom_call.1} parent=15 // pred_fallthru
          _
      $region16: #{tpu_custom_call.1} parent=5 // pred_fallthru
        _
      %p177 = scmp.le.s32.totalorder 1, %s17
      %p178 = scmp.lt.s32.totalorder %s17, 3
      %p179 = pnand %p177, %p178
      %p180 = pneg %p179
      // Predicated region
      $region25: #{tpu_custom_call.1} parent=5 // pred_check
        _
      $region26: #{tpu_custom_call.1} parent=5 // pred_check_branch
        %182 = sbr.rel (%p179) target = $region28
      $region27: #{tpu_custom_call.1} parent=5 // pred_region
        %s183 = ssub.s32 %s17, 1
        %s184 = sand.u32 %s51, 1
        %s185 = scalar_lea.sflag [#allocation7], %s184
        %s186 = sand.u32 %s51, 1
        %s187 = smul.addr %s186, 8
        %s188 = scalar_lea.vmem [#allocation6], %s187
        // Predicated region
        $region29: #{tpu_custom_call.1} parent=27 // pred_check
          %p189 = pneg %p64
        $region30: #{tpu_custom_call.1} parent=27 // pred_check_branch
          %191 = sbr.rel (%p189) target = $region32
        $region31: #{tpu_custom_call.1} parent=27 // pred_region
          %192 = dma.done %s185, 128
        $region32: #{tpu_custom_call.1} parent=27 // pred_fallthru
          _
        %s193 = sand.u32 %s79, 1
        %s194 = scalar_lea.sflag [#allocation10], %s193
        %s195 = sand.u32 %s79, 1
        %s196 = smul.addr %s195, 8
        %s197 = scalar_lea.vmem [#allocation9], %s196
        // Predicated region
        $region33: #{tpu_custom_call.1} parent=27 // pred_check
          %p198 = pneg %p92
        $region34: #{tpu_custom_call.1} parent=27 // pred_check_branch
          %200 = sbr.rel (%p198) target = $region36
        $region35: #{tpu_custom_call.1} parent=27 // pred_region
          %201 = dma.done %s194, 128
        $region36: #{tpu_custom_call.1} parent=27 // pred_fallthru
          _
        %s202 = sand.u32 %s51, 1
        %s203 = scalar_lea.sflag [#allocation7], %s202
        %s204 = sand.u32 %s51, 1
        %s205 = smul.addr %s204, 8
        %s206 = scalar_lea.vmem [#allocation6], %s205
        %p207 = pneg %p64
        %p208 = pneg %p61
        %s209 = sand.u32 %s79, 1
        %s210 = scalar_lea.sflag [#allocation10], %s209
        %s211 = sand.u32 %s79, 1
        %s212 = smul.addr %s211, 8
        %s213 = scalar_lea.vmem [#allocation9], %s212
        %p214 = pneg %p92
        %p215 = pneg %p89
        %p216 = pneg %p120
        %p217 = pneg %p117
        %s218 = sand.u32 %s107, 1
        %s219 = scalar_lea.sflag [#allocation8], %s218
        %s220 = sand.u32 %s107, 1
        %s221 = smul.addr %s220, 8
        %s222 = scalar_lea.vmem [#allocation11], %s221
        %p223 = scmp.eq.s32.totalorder %s29, 0
        // Predicated region
        $region37: #{tpu_custom_call.1} parent=27 // pred_check
          %p224 = pneg %p223
        $region38: #{tpu_custom_call.1} parent=27 // pred_check_branch
          %226 = sbr.rel (%p224) target = $region40
        $region39: #{tpu_custom_call.1} parent=27 // pred_region
          %v227 = vld [vmem:[%s188] sm:$0xff]
          %v228 = vand.u32 2147483647, %v227
          %vm229 = vcmask 261120
          %v230 = vsel %vm229, %v228, 0.0
          %231 = vadd.xlane.f32.xlu0 %v230
          %v232 = vpop.xlane.xlu0 %231
          %v233 = vmax.f32 %v232, 1e-12
          %v234 = vrcp.pop %v233
          %v235 = vmul.f32 14.285714, %v234
          %v236 = vmul.f32 %v227, %v235
          %237 = vst.msk [vmem:[#allocation2] sm:$0xff] %vm229, %v236
          %vm238 = vcmask 7168
          %239 = vst.msk [vmem:[#allocation3] sm:$0xff] %vm238, -inf
          %240 = vst.msk [vmem:[#allocation4] sm:$0xff] %vm238, 0.0
          %241 = vst.msk [vmem:[#allocation5] sm:$0xff] %vm238, 0.0
        $region40: #{tpu_custom_call.1} parent=27 // pred_fallthru
          _
        %v242 = vld [vmem:[%s197] sm:$0xff]
        %v243 = vand.u32 2147483647, %v242
        %vm244 = vcmask 261120
        %v245 = vsel %vm244, %v243, 0.0
        %246 = vadd.xlane.f32.xlu0 %v245
        %v247 = vpop.xlane.xlu0 %246
        %v248 = vmax.f32 %v247, 1e-12
        %v249 = vrcp.pop %v248
        %v250 = vmul.f32 %v242, %v249
        %v251 = vld [vmem:[#allocation2] sm:$0xff]
        %p252 = scmp.eq.s32.totalorder %s29, %s28
        // Predicated region
        $region41: #{tpu_custom_call.1} parent=27 // pred_check
          %p253 = pneg %p252
        $region42: #{tpu_custom_call.1} parent=27 // pred_check_branch
          %255 = sbr.rel (%p253) target = $region44
        $region43: #{tpu_custom_call.1} parent=27 // pred_region
          %v256 = vmul.f32 %v251, %v250
          %v257 = vsel %vm244, %v256, 0.0
          %258 = vadd.xlane.f32.xlu0 %v257
          %v259 = vpop.xlane.xlu0 %258
          %vm260 = vcmask 7168
          %261 = vst.msk [vmem:[#allocation5] sm:$0xff] %vm260, %v259
        $region44: #{tpu_custom_call.1} parent=27 // pred_fallthru
          _
        %v263 = vsel %vm244, %v251, 0
        %v266 = vsel %vm244, %v250, 0
        %268 = vmatprep.subr.mxu0 0.0
        %269 = vmatpush1.xpose.msra.mxu0 %v266
        %270 = vmatprep.subr.mxu0 0.0
        %271 = vmatpush1.xpose.msra.mxu0 0.0
        %272 = vmatprep.subr.mxu0 0.0
        %273 = vmatpush1.xpose.msra.mxu0 0.0
        %274 = vmatprep.subr.mxu0 0.0
        %275 = vmatpush1.xpose.msra.mxu0 0.0
        %276 = vmatprep.subr.mxu0 0.0
        %277 = vmatpush1.xpose.msra.mxu0 0.0
        %278 = vmatprep.subr.mxu0 0.0
        %279 = vmatpush1.xpose.msra.mxu0 0.0
        %280 = vmatprep.subr.mxu0 0.0
        %281 = vmatpush1.xpose.msra.mxu0 0.0
        %282 = vmatprep.subr.mxu0 0.0
        %283 = vmatpush1.xpose.msra.mxu0 0.0
        %284 = vmatprep.subr.mxu0 0.0
        %285 = vmatpush1.xpose.msra.mxu0 0.0
        %286 = vmatprep.subr.mxu0 0.0
        %287 = vmatpush1.xpose.msra.mxu0 0.0
        %288 = vmatprep.subr.mxu0 0.0
        %289 = vmatpush1.xpose.msra.mxu0 0.0
        %290 = vmatprep.subr.mxu0 0.0
        %291 = vmatpush1.xpose.msra.mxu0 0.0
        %292 = vmatprep.subr.mxu0 0.0
        %293 = vmatpush1.xpose.msra.mxu0 0.0
        %294 = vmatprep.subr.mxu0 0.0
        %295 = vmatpush1.xpose.msra.mxu0 0.0
        %296 = vmatprep.subr.mxu0 0.0
        %297 = vmatpush1.xpose.msra.mxu0 0.0
        %298 = vmatprep.subr.mxu0 0.0
        %299 = vmatpush1.xpose.msra.mxu0 0.0
        %300 = vmatprep.subr.mxu0 0.0
        %301 = vmatpush1.xpose.msra.mxu0 0.0
        %302 = vmatprep.subr.mxu0 0.0
        %303 = vmatpush1.xpose.msra.mxu0 0.0
        %304 = vmatprep.subr.mxu0 0.0
        %305 = vmatpush1.xpose.msra.mxu0 0.0
        %306 = vmatprep.subr.mxu0 0.0
        %307 = vmatpush1.xpose.msra.mxu0 0.0
        %308 = vmatprep.subr.mxu0 0.0
        %309 = vmatpush1.xpose.msra.mxu0 0.0
        %310 = vmatprep.subr.mxu0 0.0
        %311 = vmatpush1.xpose.msra.mxu0 0.0
        %312 = vmatprep.subr.mxu0 0.0
        %313 = vmatpush1.xpose.msra.mxu0 0.0
        %314 = vmatprep.subr.mxu0 0.0
        %315 = vmatpush1.xpose.msra.mxu0 0.0
        %316 = vmatprep.subr.mxu0 0.0
        %317 = vmatpush1.xpose.msra.mxu0 0.0
        %318 = vmatprep.subr.mxu0 0.0
        %319 = vmatpush1.xpose.msra.mxu0 0.0
        %320 = vmatprep.subr.mxu0 0.0
        %321 = vmatpush1.xpose.msra.mxu0 0.0
        %322 = vmatprep.subr.mxu0 0.0
        %323 = vmatpush1.xpose.msra.mxu0 0.0
        %324 = vmatprep.subr.mxu0 0.0
        %325 = vmatpush1.xpose.msra.mxu0 0.0
        %326 = vmatprep.subr.mxu0 0.0
        %327 = vmatpush1.xpose.msra.mxu0 0.0
        %328 = vmatprep.subr.mxu0 0.0
        %329 = vmatpush1.xpose.msra.mxu0 0.0
        %330 = vmatprep.subr.mxu0 0.0
        %331 = vmatpush1.xpose.msra.mxu0 0.0
        %332 = vmatprep.mubr.f32.mxu0 0.0
        %333 = vmatmul.mubr.f32.gmra.mrb[0].mxu0 %v263
        %v334 = vpop.f32.mrb[0].mxu0
        %v335 = vadd.f32 0.0, %v334
        %v336 = vpop.f32.mrb[0].mxu0
        %337 = vdwg.mxu0
        %v338 = vld [vmem:[#allocation3] sm:$0xff]
        %vm339 = vcmask 64512
        %v340 = vsel %vm339, %v335, -inf
        %341 = vmax.xlane.f32.xlu0 %v340
        %v342 = vpop.xlane.xlu0 %341
        %v343 = vmax.f32 %v338, %v342
        %345 = vset.pattern.permute.xlu0 0
        %346 = vperm.xlu0 %345, %v343
        %v347 = vpop.permute.xlu0 %346
        %v349 = vsub.f32 %v335, %v347
        %v350 = vmul.f32 %v349, 1.442695
        %v351 = vpow.pop %v350
        %v352 = vld [vmem:[#allocation4] sm:$0xff]
        %v353 = vsub.f32 %v338, %v343
        %v354 = vmul.f32 %v353, 1.442695
        %v355 = vpow.pop %v354
        %v356 = vmul.f32 %v352, %v355
        %v357 = vsel %vm339, %v351, 0.0
        %358 = vadd.xlane.f32.xlu0 %v357
        %v359 = vpop.xlane.xlu0 %358
        %v360 = vadd.f32 %v356, %v359
        %vm361 = vcmask 7168
        %362 = vst.msk [vmem:[#allocation4] sm:$0xff] %vm361, %v360
        %363 = vst.msk [vmem:[#allocation3] sm:$0xff] %vm361, %v343
        // Predicated region
        $region45: #{tpu_custom_call.1} parent=27 // pred_check
          %p364 = pneg %p223
        $region46: #{tpu_custom_call.1} parent=27 // pred_check_branch
          %366 = sbr.rel (%p364) target = $region48
        $region47: #{tpu_custom_call.1} parent=27 // pred_region
          %v367 = vld [vmem:[#allocation3] sm:$0xff]
          %v368 = vld [vmem:[#allocation4] sm:$0xff]
          %v369 = vlog2.pop %v368
          %v370 = vmul.f32 %v369, 0.6931472
          %v371 = vadd.f32 %v367, %v370
          %v372 = vld [vmem:[#allocation5] sm:$0xff]
          %v373 = vsub.f32 %v371, %v372
          %v374 = vsel %vm361, %v373, 0.0
          %v375 = vrot.slane %v374, 4
          %v376 = vadd.f32 %v374, %v375
          %v377 = vrot.slane %v376, 2
          %v378 = vadd.f32 %v376, %v377
          %v379 = vrot.slane %v378, 1
          %v380 = vadd.f32 %v378, %v379
          %382 = vset.pattern.permute.xlu0 0
          %383 = vperm.xlu0 %382, %v380
          %v384 = vpop.permute.xlu0 %383
          %386 = vst [vmem:[%s222] sm:$0xff] %v384
        $region48: #{tpu_custom_call.1} parent=27 // pred_fallthru
          _
        %s387 = sand.u32 %s107, 1
        %s388 = scalar_lea.sflag [#allocation8], %s387
        %s389 = sand.u32 %s107, 1
        %s390 = smul.addr %s389, 8
        %s391 = scalar_lea.vmem [#allocation11], %s390
        // Predicated region
        $region49: #{tpu_custom_call.1} parent=27 // pred_check
          %p392 = pneg %p117
        $region50: #{tpu_custom_call.1} parent=27 // pred_check_branch
          %394 = sbr.rel (%p392) target = $region52
        $region51: #{tpu_custom_call.1} parent=27 // pred_region
          %s396 = ssub.s32 128, 128
          %397 = vsyncadd %s388, %s396
          %s398 = sadd.s32 %s28, %s27
          %s399 = smul.addr %s398, 128
          %s400 = scalar_lea.hbm %s2, %s399
          %s402 = sshll.u32 %s391, 4
          %s403 = int_to_ptr.vmem [resolvable:$true] %s402
          %405 = dma.vmem_to_hbm [thread:$0]  %s403, 128, %s400, %s388
        $region52: #{tpu_custom_call.1} parent=27 // pred_fallthru
          _
      $region28: #{tpu_custom_call.1} parent=5 // pred_fallthru
        _
      %p406 = scmp.le.s32.totalorder 2, %s17
      // Predicated region
      $region53: #{tpu_custom_call.1} parent=5 // pred_check
        %p407 = pneg %p406
      $region54: #{tpu_custom_call.1} parent=5 // pred_check_branch
        %409 = sbr.rel (%p407) target = $region56
      $region55: #{tpu_custom_call.1} parent=5 // pred_region
        %s410 = ssub.s32 %s17, 2
        // Predicated region
        $region57: #{tpu_custom_call.1} parent=55 // pred_check
          %p411 = pneg %p123
        $region58: #{tpu_custom_call.1} parent=55 // pred_check_branch
          %413 = sbr.rel (%p411) target = $region60
        $region59: #{tpu_custom_call.1} parent=55 // pred_region
          %s414 = sand.u32 %s108, 1
          %s415 = scalar_lea.sflag [#allocation8], %s414
          %s416 = sand.u32 %s108, 1
          %s417 = smul.addr %s416, 8
          %s418 = scalar_lea.vmem [#allocation11], %s417
          %419 = dma.done %s415, 128
        $region60: #{tpu_custom_call.1} parent=55 // pred_fallthru
          _
      $region56: #{tpu_custom_call.1} parent=5 // pred_fallthru
        _
    $region6: #{tpu_custom_call.1} parent=1 // loop_footer
      %s21 = sadd.s32 1, %s17
    $region7: #{tpu_custom_call.1} parent=1 // loop_footer_branch
      %16 = sbr.rel target = $region3
    $region8: #{tpu_custom_call.1} parent=1 // loop_exit
      _
    %420 = vsyncpa [#allocation7], 1
    %s421 = scalar_lea.sflag [#allocation7], 1
    %422 = vsyncpa %s421, 1
    %423 = vsyncpa [#allocation10], 1
    %s424 = scalar_lea.sflag [#allocation10], 1
    %425 = vsyncpa %s424, 1
    %426 = vsyncpa [#allocation8], 1
    %s427 = scalar_lea.sflag [#allocation8], 1
    %428 = vsyncpa %s427, 1

</llo_original>
